<compile_context>
chip_gen: v6e
topology: v6e:2x2x1
jax: 0.10.0
libtpu: 0.0.40
codegen_flags: <defaults>
</compile_context>

<pallas_src>
import jax
import jax.numpy as jnp
from jax import lax
from jax.experimental import pallas as pl
from jax.experimental.pallas import tpu as pltpu

_MiB = 1024 * 1024


def _round_up(n: int, m: int) -> int:
    return ((n + m - 1) // m) * m


def _classifier_kernel(x_ref, w_ref, b_ref, o_ref):
    # x_ref: (TB, H) native dtype, w_ref: (1, H) same dtype,
    # b_ref: (1, 1) f32 in SMEM, o_ref: (1, TB) f32 (lane-dense)
    logits = lax.dot_general(
        w_ref[...], x_ref[...],
        dimension_numbers=(((1,), (1,)), ((), ())),
        preferred_element_type=jnp.float32,
    )                                               # (1, TB) on the MXU
    o_ref[...] = jax.nn.sigmoid(logits + b_ref[0, 0])


def _classifier_kernel_masked(x_ref, m_ref, w_ref, b_ref, o_ref):
    # fc(x * mask): the mask arrives as a narrow DMA stream (<= bf16) and is
    # widened to x's dtype on the VPU; the product stays in x's NATIVE dtype
    # (no full-tile f32 upcast) and feeds the MXU with f32 accumulation.
    xm = x_ref[...] * m_ref[...].astype(x_ref.dtype)
    logits = lax.dot_general(
        w_ref[...], xm,
        dimension_numbers=(((1,), (1,)), ((), ())),
        preferred_element_type=jnp.float32,
    )                                               # (1, TB)
    o_ref[...] = jax.nn.sigmoid(logits + b_ref[0, 0])


def _vmem_capacity_bytes() -> int:
    # Physical VMEM: 128 MiB (v5e/v6e), 64 MiB per TC (v7x).
    # Conservative (v7x-sized) fallback if the query is unavailable.
    try:
        return int(pltpu.get_tpu_info().vmem_capacity_bytes)
    except Exception:
        return 64 * _MiB


def classifier_forward(x, weight, bias, mask=None, *, tile_batch=None):
    """sigmoid(Linear(hidden_dim -> 1)(x [* mask])).squeeze()  (n_class == 2)

    x:      (B, H) float32 or bfloat16 (streamed in its native dtype)
    weight: (1, H)  (PyTorch nn.Linear.weight layout: (out, in))
    bias:   (1,)
    mask:   optional (B, H)
    returns (B,) float32
    """
    B, H = x.shape
    assert weight.shape == (1, H)

    # NOTE: when x is bf16 the fc weight is also cast to bf16 for the MXU
    # (tiny deviation from the f32-weight PyTorch module; within tolerance).
    w = weight.astype(x.dtype)
    b2d = bias.reshape(1, 1).astype(jnp.float32)     # SMEM scalar

    x_b = jnp.dtype(x.dtype).itemsize
    if mask is not None:
        # Narrow the mask HBM stream (the masked path is 2-stream HBM-bound):
        # never ship the mask wider than bf16. Exact for 0/1 masks; lossy only
        # for non-binary f32 masks (documented deviation).
        if jnp.dtype(mask.dtype).itemsize > 2:
            mask = mask.astype(jnp.bfloat16)
        m_b = jnp.dtype(mask.dtype).itemsize
        # per-row VMEM: double-buffered x + mask tiles, plus one x-dtype
        # (x * mask) temporary (keeps v7x's 64 MiB VMEM honest).
        row_bytes = H * (2 * (x_b + m_b) + x_b)
    else:
        row_bytes = H * 2 * x_b                      # double-buffered x tile

    # Byte-targeted batch tile: big tiles amortize the ~0.35 us/grid-step
    # overhead and keep the DMA pipeline at the HBM roofline regardless of H.
    vmem_cap = _vmem_capacity_bytes()
    tile_budget = min(max(vmem_cap // 3, 16 * _MiB), 40 * _MiB)
    vmem_limit = min(tile_budget + 16 * _MiB, vmem_cap - 8 * _MiB)

    if tile_batch is None:
        TB = max(128, (tile_budget // row_bytes) // 128 * 128)
    else:                                            # explicit override (tests)
        TB = max(128, _round_up(tile_batch, 128))
    TB = min(TB, _round_up(B, 128))                  # don't over-tile tiny batches

    # No wrapper-side jnp.pad of x/mask (that would add a full extra HBM pass
    # over the activations): the grid over-covers B and Pallas handles the
    # partial last block; garbage rows only land in output lanes >= B.
    num_tiles = pl.cdiv(B, TB)
    B_out = num_tiles * TB                           # lane-dense, full-lane stores

    x_spec = pl.BlockSpec((TB, H), lambda i: (i, 0))
    w_spec = pl.BlockSpec((1, H), lambda i: (0, 0))
    b_spec = pl.BlockSpec(memory_space=pltpu.MemorySpace.SMEM)
    o_spec = pl.BlockSpec((1, TB), lambda i: (0, i))   # lane-dense output row

    if mask is None:
        kernel = _classifier_kernel
        in_specs = [x_spec, w_spec, b_spec]
        args = (x, w, b2d)
    else:
        kernel = _classifier_kernel_masked
        m_spec = pl.BlockSpec((TB, H), lambda i: (i, 0))
        in_specs = [x_spec, m_spec, w_spec, b_spec]
        args = (x, mask, w, b2d)

    # TODO(synk): on v7x, sweep pltpu.CORE_PARALLEL on the batch axis and
    # pl.Buffered(3) on x_spec/m_spec; kept at "parallel" + double buffering
    # here for portable clean compiles across v5e/v6e/v7x.
    out = pl.pallas_call(
        kernel,
        out_shape=jax.ShapeDtypeStruct((1, B_out), jnp.float32),
        grid_spec=pltpu.PrefetchScalarGridSpec(
            num_scalar_prefetch=0,
            grid=(num_tiles,),
            in_specs=in_specs,
            out_specs=o_spec,
        ),
        compiler_params=pltpu.CompilerParams(
            dimension_semantics=("parallel",),
            vmem_limit_bytes=int(vmem_limit),
        ),
    )(*args)

    # .squeeze(): (1, B_out) -> (B,)
    return out[0, :B]


def _reference_forward(x, weight, bias):
    # pure-JAX reference matching the PyTorch module semantics (mask pre-applied)
    return jax.nn.sigmoid(x.astype(jnp.float32) @ weight.T + bias)[:, 0]


if __name__ == "__main__":
    hidden_dim = 32
    batch = 8

    key = jax.random.PRNGKey(0)
    kx, kw, kb, km = jax.random.split(key, 4)

    # Deterministic synthetic parameters (shapes from nn.Linear(hidden_dim, 1)).
    bound = 1.0 / (hidden_dim ** 0.5)  # matches nn.Linear's uniform init range
    weight = jax.random.uniform(kw, (1, hidden_dim), jnp.float32, -bound, bound)
    bias = jax.random.uniform(kb, (1,), jnp.float32, -bound, bound)
    x = jax.random.normal(kx, (batch, hidden_dim), jnp.float32)

    # 1) mask=None path, f32 activations (partial block: B=8 < TB=128, no pad)
    y = jax.block_until_ready(classifier_forward(x, weight, bias))
    y_ref = _reference_forward(x, weight, bias)
    assert y.shape == (batch,)
    assert jnp.allclose(y, y_ref, atol=1e-5, rtol=1e-5)

    # 2) masked path: forward(x, mask) == sigmoid(fc(x * mask)).squeeze()
    mask = (jax.random.uniform(km, (batch, hidden_dim)) > 0.5).astype(jnp.float32)
    ym = jax.block_until_ready(classifier_forward(x, weight, bias, mask=mask))
    ym_ref = _reference_forward(x * mask, weight, bias)
    assert jnp.allclose(ym, ym_ref, atol=1e-5, rtol=1e-5)

    # 3) multi-tile grid with a partial LAST block (no-pad path), bf16 activations
    B2 = 300
    x2 = jax.random.normal(km, (B2, hidden_dim), jnp.float32).astype(jnp.bfloat16)
    y2 = jax.block_until_ready(
        classifier_forward(x2, weight, bias, tile_batch=128))
    y2_ref = _reference_forward(x2, weight, bias)
    assert y2.shape == (B2,)
    assert jnp.allclose(y2, y2_ref, atol=2e-2, rtol=2e-2)

    # 4) masked + multi-tile partial block, bf16 activations, narrow mask stream
    mask2 = (jax.random.uniform(kb, (B2, hidden_dim)) > 0.5).astype(jnp.float32)
    y3 = jax.block_until_ready(
        classifier_forward(x2, weight, bias, mask=mask2, tile_batch=128))
    y3_ref = _reference_forward(x2.astype(jnp.float32) * mask2, weight, bias)
    assert jnp.allclose(y3, y3_ref, atol=2e-2, rtol=2e-2)

    print("KERNEL_OK")
</pallas_src>

<mosaic_0001>
module attributes {stable_mosaic.version = 11 : i64} {
  func.func @_classifier_kernel(%arg0: i32, %arg1: memref<128x32xf32, #tpu.memory_space<vmem>>, %arg2: memref<1x32xf32, #tpu.memory_space<vmem>>, %arg3: memref<1x1xf32, #tpu.memory_space<smem>>, %arg4: memref<1x128xf32, #tpu.memory_space<vmem>>) attributes {dimension_semantics = [#tpu.dimension_semantics<parallel>], iteration_bounds = array<i64: 1>, scalar_prefetch = 0 : i64, scratch_operands = 0 : i64, tpu.core_type = #tpu.core_type<tc>, window_params = [{transform_indices = @transform_0, window_bounds = array<i64: 128, 32>}, {pipeline_mode = #tpu.pipeline_mode<synchronous>, transform_indices = @transform_1, window_bounds = array<i64: 1, 32>}, {transform_indices = @transform_2, window_bounds = array<i64: 1, 1>}, {transform_indices = @transform_3, window_bounds = array<i64: 1, 128>}]} {
    %c0 = arith.constant 0 : index
    %c0_0 = arith.constant 0 : index
    %0 = vector.load %arg2[%c0, %c0_0] : memref<1x32xf32, #tpu.memory_space<vmem>>, vector<1x32xf32>
    %c0_1 = arith.constant 0 : index
    %c0_2 = arith.constant 0 : index
    %1 = vector.load %arg1[%c0_1, %c0_2] : memref<128x32xf32, #tpu.memory_space<vmem>>, vector<128x32xf32>
    %cst = arith.constant dense<0.000000e+00> : vector<1x128xf32>
    %2 = tpu.matmul %0, %1, %cst {dimension_numbers = #tpu.dot_dimension_numbers<[1], [1], [0], [0], [0, 0, 1, 0], [], []>} : vector<1x32xf32>, vector<128x32xf32>, vector<1x128xf32> -> vector<1x128xf32>
    %c0_3 = arith.constant 0 : index
    %c0_4 = arith.constant 0 : index
    %3 = memref.load %arg3[%c0_3, %c0_4] : memref<1x1xf32, #tpu.memory_space<smem>>
    %4 = vector.broadcast %3 : f32 to vector<1x128xf32>
    %5 = arith.addf %2, %4 : vector<1x128xf32>
    %6 = arith.negf %5 : vector<1x128xf32>
    %7 = math.exp %6 : vector<1x128xf32>
    %cst_5 = arith.constant 1.000000e+00 : f32
    %8 = vector.broadcast %cst_5 : f32 to vector<1x128xf32>
    %9 = arith.addf %8, %7 : vector<1x128xf32>
    %10 = arith.divf %8, %9 : vector<1x128xf32>
    %c0_6 = arith.constant 0 : index
    %c0_7 = arith.constant 0 : index
    %11 = vector.load %arg4[%c0_6, %c0_7] : memref<1x128xf32, #tpu.memory_space<vmem>>, vector<1x128xf32>
    tpu.vector_store %arg4[%c0_6, %c0_7], %10 {strides = array<i32>} : memref<1x128xf32, #tpu.memory_space<vmem>>, vector<1x128xf32>,
    return
  }
  func.func @transform_0(%arg0: i32) -> (i32, i32) {
    %c0_i32 = arith.constant 0 : i32
    %c0_i32_0 = arith.constant 0 : i32
    return %arg0, %c0_i32 : i32, i32
  }
  func.func @transform_1(%arg0: i32) -> (i32, i32) {
    %c0_i32 = arith.constant 0 : i32
    %c0_i32_0 = arith.constant 0 : i32
    %c0_i32_1 = arith.constant 0 : i32
    return %c0_i32, %c0_i32_0 : i32, i32
  }
  func.func @transform_2(%arg0: i32) -> (i32, i32) {
    %c0_i32 = arith.constant 0 : i32
    %c0_i32_0 = arith.constant 0 : i32
    %c0_i32_1 = arith.constant 0 : i32
    return %c0_i32, %c0_i32_0 : i32, i32
  }
  func.func @transform_3(%arg0: i32) -> (i32, i32) {
    %c0_i32 = arith.constant 0 : i32
    %c0_i32_0 = arith.constant 0 : i32
    return %c0_i32, %arg0 : i32, i32
  }
}

</mosaic_0001>

<llo_original>
// kernel: tpu_custom_call.1
$region0: #{tpu_custom_call.1}
  #allocation0 [shape = 'u32[]', space=smem, size = 0x4, offset = 0x4, fixed_abs, tag = 'smem constant byte address 0x4 - core index']
  #allocation1 [shape = 'u32[144,128]{1,0:T(1,128)}', space=vmem, size = 0x12000, scoped, tag = 'internal scratch']
  #allocation2 [shape = 'f32[1,1]{1,0:T(1,128)S(6)}', space=smem, size = 0x200, scoped, tag = 'scoped memory for tpu_custom_call.1']
  %s0 = inlined_call_operand.hbm [shape: f32[8,32], index: 0, kind: input, shape index: {}]
  %s1 = inlined_call_operand.vmem [shape: f32[1,32], index: 1, kind: input, shape index: {}]
  %s2 = inlined_call_operand.<no memory space> [shape: f32[1,1], index: 2, kind: input, shape index: {}]
  %s3 = inlined_call_operand.hbm [shape: f32[1,128], index: 3, kind: output, shape index: {}]
  %s4 = sld [smem:[#allocation0]]
  $region26: #{tpu_custom_call.1} parent=0
    _
  %s6 = ssub.s32 1, %s4
  %s7 = scalar_select 0, %s6, %s4
  %8 = sst [smem:[#allocation2]] %s2
  $region1: #{tpu_custom_call.1} parent=0
    #allocation3 [shape = 'u8[65536]{0}', space=vmem, size = 0x10000, scoped, tag = 'input window, operand 0, single buffered']
    #allocation4 [shape = 's32[1]{0}', space=sflag, size = 0x4, scoped, tag = 'scoped memory for tpu_custom_call.1']
    #allocation5 [shape = 's32[1]{0}', space=sflag, size = 0x4, scoped, tag = 'scoped memory for tpu_custom_call.1']
    #allocation6 [shape = 'u8[512]{0}', space=vmem, size = 0x400, scoped, tag = 'output window, operand 0, single buffered']
    %9 = vsyncpa [#allocation4], 0
    %10 = vsyncpa [#allocation5], 0
    // Predicated region
    $region2: #{tpu_custom_call.1} parent=1 // pred_check
      _
    $region3: #{tpu_custom_call.1} parent=1 // pred_check_branch
      %12 = sbr.rel (0) target = $region5
    $region4: #{tpu_custom_call.1} parent=1 // pred_region
      %s14 = ssub.s32 2048, 128
      %15 = vsyncadd [#allocation4], %s14
      %s16 = sshll.u32 [#allocation3], 4
      %s17 = int_to_ptr.vmem [resolvable:$true] %s16
      %22 = dma.hbm_to_vmem [thread:$0]  %s0, 128, %s17, [#allocation4], 128, 128, 8
    $region5: #{tpu_custom_call.1} parent=1 // pred_fallthru
      _
    // Predicated region
    $region6: #{tpu_custom_call.1} parent=1 // pred_check
      _
    $region7: #{tpu_custom_call.1} parent=1 // pred_check_branch
      %24 = sbr.rel (0) target = $region9
    $region8: #{tpu_custom_call.1} parent=1 // pred_region
      _
    $region9: #{tpu_custom_call.1} parent=1 // pred_fallthru
      _
    // Predicated region
    $region10: #{tpu_custom_call.1} parent=1 // pred_check
      _
    $region11: #{tpu_custom_call.1} parent=1 // pred_check_branch
      %26 = sbr.rel (0) target = $region13
    $region12: #{tpu_custom_call.1} parent=1 // pred_region
      _
    $region13: #{tpu_custom_call.1} parent=1 // pred_fallthru
      _
    // Predicated region
    $region14: #{tpu_custom_call.1} parent=1 // pred_check
      _
    $region15: #{tpu_custom_call.1} parent=1 // pred_check_branch
      %28 = sbr.rel (0) target = $region17
    $region16: #{tpu_custom_call.1} parent=1 // pred_region
      %29 = dma.done [#allocation4], 2048
    $region17: #{tpu_custom_call.1} parent=1 // pred_fallthru
      _
    %v30 = vld [vmem:[%s1] sm:$0x1]
    %v31 = vld [vmem:[#allocation3] sm:$0xff]
    %v32 = vld [vmem:[#allocation3 + $0x8] sm:$0xff]
    %v33 = vld [vmem:[#allocation3 + $0x10] sm:$0xff]
    %v34 = vld [vmem:[#allocation3 + $0x18] sm:$0xff]
    %v35 = vld [vmem:[#allocation3 + $0x20] sm:$0xff]
    %v36 = vld [vmem:[#allocation3 + $0x28] sm:$0xff]
    %v37 = vld [vmem:[#allocation3 + $0x30] sm:$0xff]
    %v38 = vld [vmem:[#allocation3 + $0x38] sm:$0xff]
    %v39 = vld [vmem:[#allocation3 + $0x40] sm:$0xff]
    %v40 = vld [vmem:[#allocation3 + $0x48] sm:$0xff]
    %v41 = vld [vmem:[#allocation3 + $0x50] sm:$0xff]
    %v42 = vld [vmem:[#allocation3 + $0x58] sm:$0xff]
    %v43 = vld [vmem:[#allocation3 + $0x60] sm:$0xff]
    %v44 = vld [vmem:[#allocation3 + $0x68] sm:$0xff]
    %v45 = vld [vmem:[#allocation3 + $0x70] sm:$0xff]
    %v46 = vld [vmem:[#allocation3 + $0x78] sm:$0xff]
    %s47 = sld [smem:[#allocation2]]
    %v48 = vstv %s47
    %vm49 = vcmask 261120
    %v51 = vsel %vm49, %v30, 0
    %v54 = vsel %vm49, %v31, 0
    %v57 = vsel %vm49, %v32, 0
    %v60 = vsel %vm49, %v33, 0
    %v63 = vsel %vm49, %v34, 0
    %v66 = vsel %vm49, %v35, 0
    %v69 = vsel %vm49, %v36, 0
    %v72 = vsel %vm49, %v37, 0
    %v75 = vsel %vm49, %v38, 0
    %v78 = vsel %vm49, %v39, 0
    %v81 = vsel %vm49, %v40, 0
    %v84 = vsel %vm49, %v41, 0
    %v87 = vsel %vm49, %v42, 0
    %v90 = vsel %vm49, %v43, 0
    %v93 = vsel %vm49, %v44, 0
    %v96 = vsel %vm49, %v45, 0
    %v99 = vsel %vm49, %v46, 0
    %101 = vmatprep.subr.mxu0 0.0
    %102 = vmatpush1.xpose.msra.mxu0 %v99
    %103 = vmatprep.subr.mxu0 0.0
    %104 = vmatpush1.xpose.msra.mxu0 %v96
    %105 = vmatprep.subr.mxu0 0.0
    %106 = vmatpush1.xpose.msra.mxu0 %v93
    %107 = vmatprep.subr.mxu0 0.0
    %108 = vmatpush1.xpose.msra.mxu0 %v90
    %109 = vmatprep.subr.mxu0 0.0
    %110 = vmatpush1.xpose.msra.mxu0 %v87
    %111 = vmatprep.subr.mxu0 0.0
    %112 = vmatpush1.xpose.msra.mxu0 %v84
    %113 = vmatprep.subr.mxu0 0.0
    %114 = vmatpush1.xpose.msra.mxu0 %v81
    %115 = vmatprep.subr.mxu0 0.0
    %116 = vmatpush1.xpose.msra.mxu0 %v78
    %117 = vmatprep.subr.mxu0 0.0
    %118 = vmatpush1.xpose.msra.mxu0 %v75
    %119 = vmatprep.subr.mxu0 0.0
    %120 = vmatpush1.xpose.msra.mxu0 %v72
    %121 = vmatprep.subr.mxu0 0.0
    %122 = vmatpush1.xpose.msra.mxu0 %v69
    %123 = vmatprep.subr.mxu0 0.0
    %124 = vmatpush1.xpose.msra.mxu0 %v66
    %125 = vmatprep.subr.mxu0 0.0
    %126 = vmatpush1.xpose.msra.mxu0 %v63
    %127 = vmatprep.subr.mxu0 0.0
    %128 = vmatpush1.xpose.msra.mxu0 %v60
    %129 = vmatprep.subr.mxu0 0.0
    %130 = vmatpush1.xpose.msra.mxu0 %v57
    %131 = vmatprep.subr.mxu0 0.0
    %132 = vmatpush1.xpose.msra.mxu0 %v54
    %133 = vmatprep.subr.mxu0 0.0
    %134 = vmatpush2.xpose.msra.mxu0 0.0
    %135 = vmatprep.subr.mxu0 0.0
    %136 = vmatpush2.xpose.msra.mxu0 0.0
    %137 = vmatprep.subr.mxu0 0.0
    %138 = vmatpush2.xpose.msra.mxu0 0.0
    %139 = vmatprep.subr.mxu0 0.0
    %140 = vmatpush2.xpose.msra.mxu0 0.0
    %141 = vmatprep.subr.mxu0 0.0
    %142 = vmatpush2.xpose.msra.mxu0 0.0
    %143 = vmatprep.subr.mxu0 0.0
    %144 = vmatpush2.xpose.msra.mxu0 0.0
    %145 = vmatprep.subr.mxu0 0.0
    %146 = vmatpush2.xpose.msra.mxu0 0.0
    %147 = vmatprep.subr.mxu0 0.0
    %148 = vmatpush2.xpose.msra.mxu0 0.0
    %149 = vmatprep.subr.mxu0 0.0
    %150 = vmatpush2.xpose.msra.mxu0 0.0
    %151 = vmatprep.subr.mxu0 0.0
    %152 = vmatpush2.xpose.msra.mxu0 0.0
    %153 = vmatprep.subr.mxu0 0.0
    %154 = vmatpush2.xpose.msra.mxu0 0.0
    %155 = vmatprep.subr.mxu0 0.0
    %156 = vmatpush2.xpose.msra.mxu0 0.0
    %157 = vmatprep.subr.mxu0 0.0
    %158 = vmatpush2.xpose.msra.mxu0 0.0
    %159 = vmatprep.subr.mxu0 0.0
    %160 = vmatpush2.xpose.msra.mxu0 0.0
    %161 = vmatprep.subr.mxu0 0.0
    %162 = vmatpush2.xpose.msra.mxu0 0.0
    %163 = vmatprep.subr.mxu0 0.0
    %164 = vmatpush2.xpose.msra.mxu0 0.0
    %165 = vmatprep.mubr.f32.mxu0 0.0
    %166 = vmatmul.mubr.f32.gmra.mxu0 %v51
    %v167 = vpop.f32.mrf.mxu0
    %v168 = vadd.f32 %v48, %v167
    %v169 = vpop.f32.mrf.mxu0
    %170 = vdwg.mxu0
    %v171 = vxor.u32 %v168, 2147483648
    %v172 = vmul.f32 %v171, 1.442695
    %v173 = vpow.pop %v172
    %v174 = vadd.f32 %v173, 1.0
    %v175 = vrcp.pop %v174
    %v176 = vmul.f32 1.0, %v175
    %177 = vst [vmem:[#allocation6] sm:$0x1] %v176
    // Predicated region
    $region18: #{tpu_custom_call.1} parent=1 // pred_check
      _
    $region19: #{tpu_custom_call.1} parent=1 // pred_check_branch
      %179 = sbr.rel (0) target = $region21
    $region20: #{tpu_custom_call.1} parent=1 // pred_region
      %s181 = ssub.s32 16, 16
      %182 = vsyncadd [#allocation5], %s181
      %s184 = sshll.u32 [#allocation6], 4
      %s185 = int_to_ptr.vmem [resolvable:$true] %s184
      %187 = dma.vmem_to_hbm [thread:$0]  %s185, 16, %s3, [#allocation5]
    $region21: #{tpu_custom_call.1} parent=1 // pred_fallthru
      _
    // Predicated region
    $region22: #{tpu_custom_call.1} parent=1 // pred_check
      _
    $region23: #{tpu_custom_call.1} parent=1 // pred_check_branch
      %189 = sbr.rel (0) target = $region25
    $region24: #{tpu_custom_call.1} parent=1 // pred_region
      %190 = dma.done [#allocation5], 16
    $region25: #{tpu_custom_call.1} parent=1 // pred_fallthru
      _
    %191 = vsyncpa [#allocation4], 1
    %192 = vsyncpa [#allocation5], 1

</llo_original>
